<compile_context>
chip_gen: v5e
topology: v5e:2x2
jax: 0.10.0
libtpu: 0.0.40
codegen_flags: <defaults>
</compile_context>

<pallas_src>
import functools

import jax
import jax.numpy as jnp
from jax.experimental import pallas as pl
from jax.experimental.pallas import tpu as pltpu


def _round_up(x, m):
    return (x + m - 1) // m * m


# ---------------------------------------------------------------------------
# Kernel
# ---------------------------------------------------------------------------
def _pacman_kernel(n_trunk, n_actor, n_value, fuse_heads, x_ref, *refs):
    """Fused MLP forward for one batch tile.

    All weights are pre-padded to 128-lane-dense (in_pad, out_pad) blocks, so
    every bias-add / ReLU / store is full-lane (unmasked vst).  Single-layer
    actor+value heads are fused into one matmul; multi-layer heads have their
    final weights column-padded to head_pad at disjoint offsets so the two
    head results just add.

    refs layout:
      trunk weights (bf16)   x n_trunk
      head weights  (bf16)   x 1 (fused) or n_actor + n_value
      packed biases (f32, (n_rows, bias_lanes))
      out_ref       (f32, (TB, head_pad))   lane-dense
    """
    n_head = 1 if fuse_heads else (n_actor + n_value)
    trunk_w = refs[:n_trunk]
    head_w = refs[n_trunk:n_trunk + n_head]
    b_ref = refs[n_trunk + n_head]
    out_ref = refs[n_trunk + n_head + 1]

    # x arrives already in bf16 (MXU operand dtype); accumulation stays f32.
    h = x_ref[...]

    # Trunk: Linear + ReLU per layer (input layers then hidden layers).
    row = 0
    for i in range(n_trunk):
        w = trunk_w[i]
        acc = jnp.dot(h, w[...], preferred_element_type=jnp.float32)
        acc = acc + b_ref[row:row + 1, :w.shape[1]]      # lane-aligned (x128)
        h = jnp.maximum(acc, 0.0).astype(jnp.bfloat16)
        row += 1
    # Dropout(0.5): identity in eval/inference mode.
    # TODO(synk): training-mode dropout (random mask + 1/(1-p) scale) not emitted.

    if fuse_heads:
        # Single matmul producing [actor_logits | value | zero-pad] lane-dense.
        w = head_w[0]
        out = jnp.dot(h, w[...], preferred_element_type=jnp.float32)
        out_ref[...] = out + b_ref[row:row + 1, :w.shape[1]]
    else:
        # Multi-layer heads (Linear stacks, no activation).  Final layers are
        # padded to head_pad at disjoint lane offsets, so the two results add
        # directly (no concatenate / lane shuffles).
        def run_head(ws, row):
            a, res = h, None
            for w in ws:
                acc = jnp.dot(a, w[...], preferred_element_type=jnp.float32)
                res = acc + b_ref[row:row + 1, :w.shape[1]]
                a = res.astype(jnp.bfloat16)
                row += 1
            return res, row

        a_out, row = run_head(head_w[:n_actor], row)
        v_out, row = run_head(head_w[n_actor:], row)
        out_ref[...] = a_out + v_out


# ---------------------------------------------------------------------------
# One-time parameter packing (hoisted out of the per-call path)
# ---------------------------------------------------------------------------
def pack_params(trunk_params, actor_params, value_params):
    """Pack/pad/cast parameters once; cache the result alongside the params.

    * trunk/head weights zero-padded to 128-lane-dense widths, cast to bf16
    * single-layer actor+value heads fused into one (hidden_pad, head_pad) W
    * all biases packed into ONE f32 (n_rows, bias_lanes) buffer (one DMA)
    """
    n_act = int(actor_params[-1][0].shape[1])
    n_val = int(value_params[-1][0].shape[1])
    head_pad = _round_up(n_act + n_val, 128)
    fuse_heads = (len(actor_params) == 1 and len(value_params) == 1)
    obs_dim = int(trunk_params[0][0].shape[0])

    trunk_ws, biases = [], []
    in_dim = obs_dim                      # first layer: K stays obs_dim
    for w, b in trunk_params:
        out = int(w.shape[1])
        out_pad = _round_up(out, 128)
        wp = jnp.zeros((in_dim, out_pad), jnp.float32)
        wp = wp.at[:w.shape[0], :out].set(w)
        trunk_ws.append(wp.astype(jnp.bfloat16))
        biases.append(jnp.zeros((out_pad,), jnp.float32).at[:out].set(
            b.reshape(-1)))
        in_dim = out_pad
    hidden_pad = in_dim

    head_ws = []
    if fuse_heads:
        (w_a, b_a), (w_v, b_v) = actor_params[0], value_params[0]
        wh = jnp.zeros((hidden_pad, head_pad), jnp.float32)
        wh = wh.at[:w_a.shape[0], :n_act].set(w_a)
        wh = wh.at[:w_v.shape[0], n_act:n_act + n_val].set(w_v)
        head_ws.append(wh.astype(jnp.bfloat16))
        bh = jnp.zeros((head_pad,), jnp.float32)
        bh = bh.at[:n_act].set(b_a.reshape(-1))
        bh = bh.at[n_act:n_act + n_val].set(b_v.reshape(-1))
        biases.append(bh)
    else:
        def pack_head(params, col_off):
            in_d = hidden_pad
            for li, (w, b) in enumerate(params):
                out = int(w.shape[1])
                last = li == len(params) - 1
                out_pad = head_pad if last else _round_up(out, 128)
                off = col_off if last else 0
                wp = jnp.zeros((in_d, out_pad), jnp.float32)
                wp = wp.at[:w.shape[0], off:off + out].set(w)
                head_ws.append(wp.astype(jnp.bfloat16))
                biases.append(jnp.zeros((out_pad,), jnp.float32)
                              .at[off:off + out].set(b.reshape(-1)))
                in_d = out_pad
        pack_head(actor_params, 0)
        pack_head(value_params, n_act)

    bias_lanes = max(int(b.shape[0]) for b in biases)
    b_packed = jnp.zeros((len(biases), bias_lanes), jnp.float32)
    for r, b in enumerate(biases):
        b_packed = b_packed.at[r, :b.shape[0]].set(b)

    return dict(
        obs_dim=obs_dim, n_act=n_act, n_val=n_val, head_pad=head_pad,
        fuse_heads=fuse_heads, n_trunk=len(trunk_params),
        n_actor=len(actor_params), n_value=len(value_params),
        weights=tuple(trunk_ws + head_ws), b_packed=b_packed)


# ---------------------------------------------------------------------------
# Wrapper (per-call path)
# ---------------------------------------------------------------------------
def _default_batch_splits():
    """2-way batch split on dual-TensorCore v7x, single grid step otherwise."""
    try:
        kind = jax.devices()[0].device_kind.lower()
    except Exception:
        return 1
    return 2 if ("v7" in kind or "tpu7" in kind) else 1


def pacman_forward(x, packed, *, num_batch_splits=None, max_block_batch=2048):
    """Fused actor-critic forward from pre-packed params.

    x      : (B, obs_dim)
    packed : output of pack_params()
    Returns (logits (B, A), value (B,)) -- value already squeezed like
    value_function().squeeze(1).
    """
    B, obs_dim = x.shape
    assert obs_dim == packed["obs_dim"]
    n_act, n_val = packed["n_act"], packed["n_val"]
    head_pad = packed["head_pad"]
    weights, b_packed = packed["weights"], packed["b_packed"]

    if num_batch_splits is None:
        num_batch_splits = _default_batch_splits()

    # Grid sizing: one step on 1-TC chips; equal tiles across TCs on v7x.
    # 16-row granularity keeps bf16 sublane packing of the x tile clean.
    tb = max(16, _round_up(-(-B // num_batch_splits), 16))
    tb = min(tb, max_block_batch)
    Bp = _round_up(B, tb)
    x_in = x.astype(jnp.bfloat16)              # halves input DMA bytes
    if Bp != B:                                # skipped for typical RL batches
        x_in = jnp.pad(x_in, ((0, Bp - B), (0, 0)))

    kernel = functools.partial(
        _pacman_kernel, packed["n_trunk"], packed["n_actor"],
        packed["n_value"], packed["fuse_heads"])

    # Advisory cost estimate for XLA's scheduler (free to add).
    flops = Bp * sum(2 * int(w.shape[0]) * int(w.shape[1]) for w in weights)
    weight_bytes = sum(int(w.size) * w.dtype.itemsize for w in weights)
    bias_bytes = int(b_packed.size) * 4
    bytes_accessed = (int(x_in.size) * 2 + Bp * head_pad * 4
                      + weight_bytes + bias_bytes)
    cost = pl.CostEstimate(flops=int(flops), transcendentals=0,
                           bytes_accessed=int(bytes_accessed))

    # Explicit scoped-VMEM limit (footprint-derived, capped with headroom for
    # v7x's 64 MiB physical VMEM).
    max_pad = max(int(w.shape[1]) for w in weights)
    step_bytes = (weight_bytes + bias_bytes
                  + 2 * (tb * obs_dim * 2 + tb * head_pad * 4)  # dbl-buf I/O
                  + 8 * tb * max_pad)                           # live interms
    vmem_limit = int(min(48 * 2**20, max(16 * 2**20, 4 * step_bytes)))

    def const_spec(arr):
        # Grid-invariant operand: full block, constant index map.
        # (pipeline_mode=pl.Buffered(1) would drop the redundant second buffer;
        #  negligible at these sizes, omitted for portability.)
        return pl.BlockSpec(arr.shape, lambda i: (0, 0))

    out = pl.pallas_call(
        kernel,
        grid=(Bp // tb,),
        out_shape=jax.ShapeDtypeStruct((Bp, head_pad), jnp.float32),
        in_specs=([pl.BlockSpec((tb, obs_dim), lambda i: (i, 0))]
                  + [const_spec(w) for w in weights]
                  + [const_spec(b_packed)]),
        out_specs=pl.BlockSpec((tb, head_pad), lambda i: (i, 0)),
        compiler_params=pltpu.CompilerParams(
            dimension_semantics=("parallel",),
            vmem_limit_bytes=vmem_limit),
        cost_estimate=cost,
    )(x_in, *weights, b_packed)

    logits = out[:B, :n_act]
    value = out[:B, n_act:n_act + n_val]
    if n_val == 1:
        value = value[:, 0]
    return logits, value


# ---------------------------------------------------------------------------
# Deterministic parameter init (normc-style: normal, normalized over in-axis)
# ---------------------------------------------------------------------------
def _make_linear(key, in_size, out_size, std=1.0):
    w = jax.random.normal(key, (in_size, out_size), dtype=jnp.float32)
    w = w * std / jnp.sqrt(jnp.sum(jnp.square(w), axis=0, keepdims=True))
    b = jnp.zeros((1, out_size), dtype=jnp.float32)
    return w, b


def build_params(key, sizes):
    params = []
    for in_size, out_size in sizes:
        key, sub = jax.random.split(key)
        params.append(_make_linear(sub, in_size, out_size))
    return key, params


# Pure-JAX f32 reference (matches the torch module's math).
def reference_forward(x, trunk_params, actor_params, value_params):
    h = x.astype(jnp.float32)
    for w, b in trunk_params:
        h = jnp.maximum(h @ w + b, 0.0)
    a = h
    for w, b in actor_params:
        a = a @ w + b
    v = h
    for w, b in value_params:
        v = v @ w + b
    return a, v[:, 0]


if __name__ == "__main__":
    # Small shapes consistent with the module's custom_model_config.
    batch = 512          # RL rollout-style batch
    obs_dim = 16
    hidden = 32
    num_actions = 5

    input_layer_sizes = [(obs_dim, hidden)]
    hidden_layer_sizes = [(hidden, hidden)]
    actor_layer_sizes = [(hidden, num_actions)]
    value_layer_sizes = [(hidden, 1)]

    key = jax.random.PRNGKey(0)
    key, x_key = jax.random.split(key)
    x = jax.random.normal(x_key, (batch, obs_dim), dtype=jnp.float32)

    key, input_params = build_params(key, input_layer_sizes)
    key, hidden_params = build_params(key, hidden_layer_sizes)
    key, actor_params = build_params(key, actor_layer_sizes)
    key, value_params = build_params(key, value_layer_sizes)

    trunk_params = input_params + hidden_params

    # Pack once (hoisted off the inference critical path), reuse per call.
    packed = pack_params(trunk_params, actor_params, value_params)

    logits, value = pacman_forward(x, packed)
    logits = jax.block_until_ready(logits)
    value = jax.block_until_ready(value)

    ref_logits, ref_value = reference_forward(x, trunk_params, actor_params,
                                              value_params)

    assert logits.shape == (batch, num_actions)
    assert value.shape == (batch,)
    # bf16 MXU operands with f32 accumulation -> loose-but-safe tolerance.
    assert jnp.allclose(logits, ref_logits, atol=5e-2, rtol=5e-2), (
        float(jnp.max(jnp.abs(logits - ref_logits))))
    assert jnp.allclose(value, ref_value, atol=5e-2, rtol=5e-2), (
        float(jnp.max(jnp.abs(value - ref_value))))

    print("KERNEL_OK")
</pallas_src>

<mosaic_0001>
module attributes {stable_mosaic.version = 11 : i64} {
  func.func @_pacman_kernel(%arg0: i32, %arg1: memref<512x16xbf16, #tpu.memory_space<vmem>>, %arg2: memref<16x128xbf16, #tpu.memory_space<vmem>>, %arg3: memref<128x128xbf16, #tpu.memory_space<vmem>>, %arg4: memref<128x128xbf16, #tpu.memory_space<vmem>>, %arg5: memref<3x128xf32, #tpu.memory_space<vmem>>, %arg6: memref<512x128xf32, #tpu.memory_space<vmem>>) attributes {dimension_semantics = [#tpu.dimension_semantics<parallel>], iteration_bounds = array<i64: 1>, scalar_prefetch = 0 : i64, scratch_operands = 0 : i64, tpu.core_type = #tpu.core_type<tc>, window_params = [{transform_indices = @transform_0, window_bounds = array<i64: 512, 16>}, {pipeline_mode = #tpu.pipeline_mode<synchronous>, transform_indices = @transform_1, window_bounds = array<i64: 16, 128>}, {pipeline_mode = #tpu.pipeline_mode<synchronous>, transform_indices = @transform_2, window_bounds = array<i64: 128, 128>}, {pipeline_mode = #tpu.pipeline_mode<synchronous>, transform_indices = @transform_3, window_bounds = array<i64: 128, 128>}, {pipeline_mode = #tpu.pipeline_mode<synchronous>, transform_indices = @transform_4, window_bounds = array<i64: 3, 128>}, {transform_indices = @transform_5, window_bounds = array<i64: 512, 128>}]} {
    %c0 = arith.constant 0 : index
    %c0_0 = arith.constant 0 : index
    %0 = vector.load %arg1[%c0, %c0_0] : memref<512x16xbf16, #tpu.memory_space<vmem>>, vector<512x16xbf16>
    %c0_1 = arith.constant 0 : index
    %c0_2 = arith.constant 0 : index
    %1 = vector.load %arg2[%c0_1, %c0_2] : memref<16x128xbf16, #tpu.memory_space<vmem>>, vector<16x128xbf16>
    %cst = arith.constant dense<0.000000e+00> : vector<512x128xf32>
    %2 = tpu.matmul %0, %1, %cst {dimension_numbers = #tpu.dot_dimension_numbers<[1], [0], [0], [1], [0, 0, 1, 1], [], []>} : vector<512x16xbf16>, vector<16x128xbf16>, vector<512x128xf32> -> vector<512x128xf32>
    %c0_3 = arith.constant 0 : index
    %c0_4 = arith.constant 0 : index
    %3 = vector.load %arg5[%c0_3, %c0_4] : memref<3x128xf32, #tpu.memory_space<vmem>>, vector<1x128xf32>
    %4 = vector.broadcast %3 : vector<1x128xf32> to vector<512x128xf32>
    %5 = arith.addf %2, %4 : vector<512x128xf32>
    %cst_5 = arith.constant 0.000000e+00 : f32
    %6 = vector.broadcast %cst_5 : f32 to vector<512x128xf32>
    %7 = arith.maximumf %5, %6 : vector<512x128xf32>
    %8 = arith.truncf %7 : vector<512x128xf32> to vector<512x128xbf16>
    %c0_6 = arith.constant 0 : index
    %c0_7 = arith.constant 0 : index
    %9 = vector.load %arg3[%c0_6, %c0_7] : memref<128x128xbf16, #tpu.memory_space<vmem>>, vector<128x128xbf16>
    %cst_8 = arith.constant dense<0.000000e+00> : vector<512x128xf32>
    %10 = tpu.matmul %8, %9, %cst_8 {dimension_numbers = #tpu.dot_dimension_numbers<[1], [0], [0], [1], [0, 0, 1, 1], [], []>} : vector<512x128xbf16>, vector<128x128xbf16>, vector<512x128xf32> -> vector<512x128xf32>
    %c1 = arith.constant 1 : index
    %c0_9 = arith.constant 0 : index
    %11 = vector.load %arg5[%c1, %c0_9] : memref<3x128xf32, #tpu.memory_space<vmem>>, vector<1x128xf32>
    %12 = vector.broadcast %11 : vector<1x128xf32> to vector<512x128xf32>
    %13 = arith.addf %10, %12 : vector<512x128xf32>
    %cst_10 = arith.constant 0.000000e+00 : f32
    %14 = vector.broadcast %cst_10 : f32 to vector<512x128xf32>
    %15 = arith.maximumf %13, %14 : vector<512x128xf32>
    %16 = arith.truncf %15 : vector<512x128xf32> to vector<512x128xbf16>
    %c0_11 = arith.constant 0 : index
    %c0_12 = arith.constant 0 : index
    %17 = vector.load %arg4[%c0_11, %c0_12] : memref<128x128xbf16, #tpu.memory_space<vmem>>, vector<128x128xbf16>
    %cst_13 = arith.constant dense<0.000000e+00> : vector<512x128xf32>
    %18 = tpu.matmul %16, %17, %cst_13 {dimension_numbers = #tpu.dot_dimension_numbers<[1], [0], [0], [1], [0, 0, 1, 1], [], []>} : vector<512x128xbf16>, vector<128x128xbf16>, vector<512x128xf32> -> vector<512x128xf32>
    %c2 = arith.constant 2 : index
    %c0_14 = arith.constant 0 : index
    %19 = vector.load %arg5[%c2, %c0_14] : memref<3x128xf32, #tpu.memory_space<vmem>>, vector<1x128xf32>
    %20 = vector.broadcast %19 : vector<1x128xf32> to vector<512x128xf32>
    %21 = arith.addf %18, %20 : vector<512x128xf32>
    %c0_15 = arith.constant 0 : index
    %c0_16 = arith.constant 0 : index
    %22 = vector.load %arg6[%c0_15, %c0_16] : memref<512x128xf32, #tpu.memory_space<vmem>>, vector<512x128xf32>
    tpu.vector_store %arg6[%c0_15, %c0_16], %21 {strides = array<i32>} : memref<512x128xf32, #tpu.memory_space<vmem>>, vector<512x128xf32>,
    return
  }
  func.func @transform_0(%arg0: i32) -> (i32, i32) {
    %c0_i32 = arith.constant 0 : i32
    %c0_i32_0 = arith.constant 0 : i32
    return %arg0, %c0_i32 : i32, i32
  }
  func.func @transform_1(%arg0: i32) -> (i32, i32) {
    %c0_i32 = arith.constant 0 : i32
    %c0_i32_0 = arith.constant 0 : i32
    %c0_i32_1 = arith.constant 0 : i32
    return %c0_i32, %c0_i32_0 : i32, i32
  }
  func.func @transform_2(%arg0: i32) -> (i32, i32) {
    %c0_i32 = arith.constant 0 : i32
    %c0_i32_0 = arith.constant 0 : i32
    %c0_i32_1 = arith.constant 0 : i32
    return %c0_i32, %c0_i32_0 : i32, i32
  }
  func.func @transform_3(%arg0: i32) -> (i32, i32) {
    %c0_i32 = arith.constant 0 : i32
    %c0_i32_0 = arith.constant 0 : i32
    %c0_i32_1 = arith.constant 0 : i32
    return %c0_i32, %c0_i32_0 : i32, i32
  }
  func.func @transform_4(%arg0: i32) -> (i32, i32) {
    %c0_i32 = arith.constant 0 : i32
    %c0_i32_0 = arith.constant 0 : i32
    %c0_i32_1 = arith.constant 0 : i32
    return %c0_i32, %c0_i32_0 : i32, i32
  }
  func.func @transform_5(%arg0: i32) -> (i32, i32) {
    %c0_i32 = arith.constant 0 : i32
    %c0_i32_0 = arith.constant 0 : i32
    return %arg0, %c0_i32 : i32, i32
  }
}

</mosaic_0001>

<llo_original>
// kernel: tpu_custom_call.1
$region0: #{tpu_custom_call.1}
  #allocation0 [shape = 'u32[]', space=smem, size = 0x4, offset = 0x4, fixed_abs, tag = 'smem constant byte address 0x4 - core index']
  #allocation1 [shape = 'u32[72,128]{1,0:T(1,128)}', space=vmem, size = 0x9000, scoped, tag = 'internal scratch']
  %s0 = inlined_call_operand.vmem [shape: bf16[512,16], index: 0, kind: input, shape index: {}]
  %s1 = inlined_call_operand.vmem [shape: bf16[16,128], index: 1, kind: input, shape index: {}]
  %s2 = inlined_call_operand.vmem [shape: bf16[128,128], index: 2, kind: input, shape index: {}]
  %s3 = inlined_call_operand.vmem [shape: bf16[128,128], index: 3, kind: input, shape index: {}]
  %s4 = inlined_call_operand.vmem [shape: f32[3,128], index: 4, kind: input, shape index: {}]
  %s5 = inlined_call_operand.hbm [shape: f32[512,128], index: 5, kind: output, shape index: {}]
  %s6 = sld [smem:[#allocation0]]
  $region30: #{tpu_custom_call.1} parent=0
    _
  %s8 = ssub.s32 1, %s6
  %s9 = scalar_select 0, %s8, %s6
  $region1: #{tpu_custom_call.1} parent=0
    #allocation2 [shape = 'u8[262144]{0}', space=vmem, size = 0x40000, scoped, tag = 'output window, operand 0, single buffered']
    #allocation3 [shape = 's32[1]{0}', space=sflag, size = 0x4, scoped, tag = 'scoped memory for tpu_custom_call.1']
    %10 = vsyncpa [#allocation3], 0
    // Predicated region
    $region2: #{tpu_custom_call.1} parent=1 // pred_check
      _
    $region3: #{tpu_custom_call.1} parent=1 // pred_check_branch
      %12 = sbr.rel (0) target = $region5
    $region4: #{tpu_custom_call.1} parent=1 // pred_region
      _
    $region5: #{tpu_custom_call.1} parent=1 // pred_fallthru
      _
    // Predicated region
    $region6: #{tpu_custom_call.1} parent=1 // pred_check
      _
    $region7: #{tpu_custom_call.1} parent=1 // pred_check_branch
      %14 = sbr.rel (0) target = $region9
    $region8: #{tpu_custom_call.1} parent=1 // pred_region
      _
    $region9: #{tpu_custom_call.1} parent=1 // pred_fallthru
      _
    // Predicated region
    $region10: #{tpu_custom_call.1} parent=1 // pred_check
      _
    $region11: #{tpu_custom_call.1} parent=1 // pred_check_branch
      %16 = sbr.rel (0) target = $region13
    $region12: #{tpu_custom_call.1} parent=1 // pred_region
      _
    $region13: #{tpu_custom_call.1} parent=1 // pred_fallthru
      _
    // Predicated region
    $region14: #{tpu_custom_call.1} parent=1 // pred_check
      _
    $region15: #{tpu_custom_call.1} parent=1 // pred_check_branch
      %18 = sbr.rel (0) target = $region17
    $region16: #{tpu_custom_call.1} parent=1 // pred_region
      _
    $region17: #{tpu_custom_call.1} parent=1 // pred_fallthru
      _
    // Predicated region
    $region18: #{tpu_custom_call.1} parent=1 // pred_check
      _
    $region19: #{tpu_custom_call.1} parent=1 // pred_check_branch
      %20 = sbr.rel (0) target = $region21
    $region20: #{tpu_custom_call.1} parent=1 // pred_region
      _
    $region21: #{tpu_custom_call.1} parent=1 // pred_fallthru
      _
    %v22 = vld [vmem:[%s0] sm:$0xf]
    %v23 = vld [vmem:[%s0 + $0x4] sm:$0xf]
    %v24 = vld [vmem:[%s0 + $0x8] sm:$0xf]
    %v25 = vld [vmem:[%s0 + $0xc] sm:$0xf]
    %v26 = vld [vmem:[%s0 + $0x10] sm:$0xf]
    %v27 = vld [vmem:[%s0 + $0x14] sm:$0xf]
    %v28 = vld [vmem:[%s0 + $0x18] sm:$0xf]
    %v29 = vld [vmem:[%s0 + $0x1c] sm:$0xf]
    %v30 = vld [vmem:[%s0 + $0x20] sm:$0xf]
    %v31 = vld [vmem:[%s0 + $0x24] sm:$0xf]
    %v32 = vld [vmem:[%s0 + $0x28] sm:$0xf]
    %v33 = vld [vmem:[%s0 + $0x2c] sm:$0xf]
    %v34 = vld [vmem:[%s0 + $0x30] sm:$0xf]
    %v35 = vld [vmem:[%s0 + $0x34] sm:$0xf]
    %v36 = vld [vmem:[%s0 + $0x38] sm:$0xf]
    %v37 = vld [vmem:[%s0 + $0x3c] sm:$0xf]
    %v38 = vld [vmem:[%s0 + $0x40] sm:$0xf]
    %v39 = vld [vmem:[%s0 + $0x44] sm:$0xf]
    %v40 = vld [vmem:[%s0 + $0x48] sm:$0xf]
    %v41 = vld [vmem:[%s0 + $0x4c] sm:$0xf]
    %v42 = vld [vmem:[%s0 + $0x50] sm:$0xf]
    %v43 = vld [vmem:[%s0 + $0x54] sm:$0xf]
    %v44 = vld [vmem:[%s0 + $0x58] sm:$0xf]
    %v45 = vld [vmem:[%s0 + $0x5c] sm:$0xf]
    %v46 = vld [vmem:[%s0 + $0x60] sm:$0xf]
    %v47 = vld [vmem:[%s0 + $0x64] sm:$0xf]
    %v48 = vld [vmem:[%s0 + $0x68] sm:$0xf]
    %v49 = vld [vmem:[%s0 + $0x6c] sm:$0xf]
    %v50 = vld [vmem:[%s0 + $0x70] sm:$0xf]
    %v51 = vld [vmem:[%s0 + $0x74] sm:$0xf]
    %v52 = vld [vmem:[%s0 + $0x78] sm:$0xf]
    %v53 = vld [vmem:[%s0 + $0x7c] sm:$0xf]
    %v54 = vld [vmem:[%s0 + $0x80] sm:$0xf]
    %v55 = vld [vmem:[%s0 + $0x84] sm:$0xf]
    %v56 = vld [vmem:[%s0 + $0x88] sm:$0xf]
    %v57 = vld [vmem:[%s0 + $0x8c] sm:$0xf]
    %v58 = vld [vmem:[%s0 + $0x90] sm:$0xf]
    %v59 = vld [vmem:[%s0 + $0x94] sm:$0xf]
    %v60 = vld [vmem:[%s0 + $0x98] sm:$0xf]
    %v61 = vld [vmem:[%s0 + $0x9c] sm:$0xf]
    %v62 = vld [vmem:[%s0 + $0xa0] sm:$0xf]
    %v63 = vld [vmem:[%s0 + $0xa4] sm:$0xf]
    %v64 = vld [vmem:[%s0 + $0xa8] sm:$0xf]
    %v65 = vld [vmem:[%s0 + $0xac] sm:$0xf]
    %v66 = vld [vmem:[%s0 + $0xb0] sm:$0xf]
    %v67 = vld [vmem:[%s0 + $0xb4] sm:$0xf]
    %v68 = vld [vmem:[%s0 + $0xb8] sm:$0xf]
    %v69 = vld [vmem:[%s0 + $0xbc] sm:$0xf]
    %v70 = vld [vmem:[%s0 + $0xc0] sm:$0xf]
    %v71 = vld [vmem:[%s0 + $0xc4] sm:$0xf]
    %v72 = vld [vmem:[%s0 + $0xc8] sm:$0xf]
    %v73 = vld [vmem:[%s0 + $0xcc] sm:$0xf]
    %v74 = vld [vmem:[%s0 + $0xd0] sm:$0xf]
    %v75 = vld [vmem:[%s0 + $0xd4] sm:$0xf]
    %v76 = vld [vmem:[%s0 + $0xd8] sm:$0xf]
    %v77 = vld [vmem:[%s0 + $0xdc] sm:$0xf]
    %v78 = vld [vmem:[%s0 + $0xe0] sm:$0xf]
    %v79 = vld [vmem:[%s0 + $0xe4] sm:$0xf]
    %v80 = vld [vmem:[%s0 + $0xe8] sm:$0xf]
    %v81 = vld [vmem:[%s0 + $0xec] sm:$0xf]
    %v82 = vld [vmem:[%s0 + $0xf0] sm:$0xf]
    %v83 = vld [vmem:[%s0 + $0xf4] sm:$0xf]
    %v84 = vld [vmem:[%s0 + $0xf8] sm:$0xf]
    %v85 = vld [vmem:[%s0 + $0xfc] sm:$0xf]
    %v86 = vld [vmem:[%s1] sm:$0xf]
    %v87 = vld [vmem:[%s1 + $0x4] sm:$0xf]
    %v88 = vld [vmem:[%s4] sm:$0x1]
    %v89 = vperm.slane %v88, 0
    %v154 = vunpack.c.l.b16 %v22
    %v155 = vunpack.c.l.b16 %v23
    %v156 = vunpack.c.l.b16 %v24
    %v157 = vunpack.c.l.b16 %v25
    %v158 = vunpack.c.l.b16 %v26
    %v159 = vunpack.c.l.b16 %v27
    %v160 = vunpack.c.l.b16 %v28
    %v161 = vunpack.c.l.b16 %v29
    %v162 = vunpack.c.l.b16 %v30
    %v163 = vunpack.c.l.b16 %v31
    %v164 = vunpack.c.l.b16 %v32
    %v165 = vunpack.c.l.b16 %v33
    %v166 = vunpack.c.l.b16 %v34
    %v167 = vunpack.c.l.b16 %v35
    %v168 = vunpack.c.l.b16 %v36
    %v169 = vunpack.c.l.b16 %v37
    %v170 = vunpack.c.l.b16 %v38
    %v171 = vunpack.c.l.b16 %v39
    %v172 = vunpack.c.l.b16 %v40
    %v173 = vunpack.c.l.b16 %v41
    %v174 = vunpack.c.l.b16 %v42
    %v175 = vunpack.c.l.b16 %v43
    %v176 = vunpack.c.l.b16 %v44
    %v177 = vunpack.c.l.b16 %v45
    %v178 = vunpack.c.l.b16 %v46
    %v179 = vunpack.c.l.b16 %v47
    %v180 = vunpack.c.l.b16 %v48
    %v181 = vunpack.c.l.b16 %v49
    %v182 = vunpack.c.l.b16 %v50
    %v183 = vunpack.c.l.b16 %v51
    %v184 = vunpack.c.l.b16 %v52
    %v185 = vunpack.c.l.b16 %v53
    %v186 = vunpack.c.l.b16 %v54
    %v187 = vunpack.c.l.b16 %v55
    %v188 = vunpack.c.l.b16 %v56
    %v189 = vunpack.c.l.b16 %v57
    %v190 = vunpack.c.l.b16 %v58
    %v191 = vunpack.c.l.b16 %v59
    %v192 = vunpack.c.l.b16 %v60
    %v193 = vunpack.c.l.b16 %v61
    %v194 = vunpack.c.l.b16 %v62
    %v195 = vunpack.c.l.b16 %v63
    %v196 = vunpack.c.l.b16 %v64
    %v197 = vunpack.c.l.b16 %v65
    %v198 = vunpack.c.l.b16 %v66
    %v199 = vunpack.c.l.b16 %v67
    %v200 = vunpack.c.l.b16 %v68
    %v201 = vunpack.c.l.b16 %v69
    %v202 = vunpack.c.l.b16 %v70
    %v203 = vunpack.c.l.b16 %v71
    %v204 = vunpack.c.l.b16 %v72
    %v205 = vunpack.c.l.b16 %v73
    %v206 = vunpack.c.l.b16 %v74
    %v207 = vunpack.c.l.b16 %v75
    %v208 = vunpack.c.l.b16 %v76
    %v209 = vunpack.c.l.b16 %v77
    %v210 = vunpack.c.l.b16 %v78
    %v211 = vunpack.c.l.b16 %v79
    %v212 = vunpack.c.l.b16 %v80
    %v213 = vunpack.c.l.b16 %v81
    %v214 = vunpack.c.l.b16 %v82
    %v215 = vunpack.c.l.b16 %v83
    %v216 = vunpack.c.l.b16 %v84
    %v217 = vunpack.c.l.b16 %v85
    %v218 = vpack.c.b16 %v155, %v154
    %v219 = vpack.c.b16 %v157, %v156
    %v220 = vpack.c.b16 %v159, %v158
    %v221 = vpack.c.b16 %v161, %v160
    %v222 = vpack.c.b16 %v163, %v162
    %v223 = vpack.c.b16 %v165, %v164
    %v224 = vpack.c.b16 %v167, %v166
    %v225 = vpack.c.b16 %v169, %v168
    %v226 = vpack.c.b16 %v171, %v170
    %v227 = vpack.c.b16 %v173, %v172
    %v228 = vpack.c.b16 %v175, %v174
    %v229 = vpack.c.b16 %v177, %v176
    %v230 = vpack.c.b16 %v179, %v178
    %v231 = vpack.c.b16 %v181, %v180
    %v232 = vpack.c.b16 %v183, %v182
    %v233 = vpack.c.b16 %v185, %v184
    %v234 = vpack.c.b16 %v187, %v186
    %v235 = vpack.c.b16 %v189, %v188
    %v236 = vpack.c.b16 %v191, %v190
    %v237 = vpack.c.b16 %v193, %v192
    %v238 = vpack.c.b16 %v195, %v194
    %v239 = vpack.c.b16 %v197, %v196
    %v240 = vpack.c.b16 %v199, %v198
    %v241 = vpack.c.b16 %v201, %v200
    %v242 = vpack.c.b16 %v203, %v202
    %v243 = vpack.c.b16 %v205, %v204
    %v244 = vpack.c.b16 %v207, %v206
    %v245 = vpack.c.b16 %v209, %v208
    %v246 = vpack.c.b16 %v211, %v210
    %v247 = vpack.c.b16 %v213, %v212
    %v248 = vpack.c.b16 %v215, %v214
    %v249 = vpack.c.b16 %v217, %v216
    %v252 = vunpack.c.l.b16 %v86
    %v253 = vunpack.c.l.b16 %v87
    %v254 = vpack.c.b16 %v253, %v252
    %vm256 = vcmask 130048
    %v258 = vsel %vm256, %v218, 0
    %v261 = vsel %vm256, %v219, 0
    %v264 = vsel %vm256, %v220, 0
    %v267 = vsel %vm256, %v221, 0
    %v270 = vsel %vm256, %v222, 0
    %v273 = vsel %vm256, %v223, 0
    %v276 = vsel %vm256, %v224, 0
    %v279 = vsel %vm256, %v225, 0
    %v282 = vsel %vm256, %v226, 0
    %v285 = vsel %vm256, %v227, 0
    %v288 = vsel %vm256, %v228, 0
    %v291 = vsel %vm256, %v229, 0
    %v294 = vsel %vm256, %v230, 0
    %v297 = vsel %vm256, %v231, 0
    %v300 = vsel %vm256, %v232, 0
    %v303 = vsel %vm256, %v233, 0
    %v306 = vsel %vm256, %v234, 0
    %v309 = vsel %vm256, %v235, 0
    %v312 = vsel %vm256, %v236, 0
    %v315 = vsel %vm256, %v237, 0
    %v318 = vsel %vm256, %v238, 0
    %v321 = vsel %vm256, %v239, 0
    %v324 = vsel %vm256, %v240, 0
    %v327 = vsel %vm256, %v241, 0
    %v330 = vsel %vm256, %v242, 0
    %v333 = vsel %vm256, %v243, 0
    %v336 = vsel %vm256, %v244, 0
    %v339 = vsel %vm256, %v245, 0
    %v342 = vsel %vm256, %v246, 0
    %v345 = vsel %vm256, %v247, 0
    %v348 = vsel %vm256, %v248, 0
    %v351 = vsel %vm256, %v249, 0
    %353 = vmatpush.bf16.msra.mxu0 0
    %354 = vmatpush.bf16.msra.mxu0 0
    %355 = vmatpush.bf16.msra.mxu0 0
    %356 = vmatpush.bf16.msra.mxu0 0
    %357 = vmatpush.bf16.msra.mxu0 0
    %358 = vmatpush.bf16.msra.mxu0 0
    %359 = vmatpush.bf16.msra.mxu0 0
    %360 = vmatpush.bf16.msra.mxu0 %v254
    %361 = vmatmul.bf16.gmra.mxu0 %v258
    %v362 = vpop.f32.mrf.mxu0
    %v363 = vadd.f32 %v89, %v362
    %v364 = vpop.f32.mrf.mxu0
    %v365 = vadd.f32 %v89, %v364
    %366 = vmatmul.bf16.gmra.mxu0 %v261
    %v367 = vpop.f32.mrf.mxu0
    %v368 = vadd.f32 %v89, %v367
    %v369 = vpop.f32.mrf.mxu0
    %v370 = vadd.f32 %v89, %v369
    %371 = vmatmul.bf16.gmra.mxu0 %v264
    %v372 = vpop.f32.mrf.mxu0
    %v373 = vadd.f32 %v89, %v372
    %v374 = vpop.f32.mrf.mxu0
    %v375 = vadd.f32 %v89, %v374
    %376 = vmatmul.bf16.gmra.mxu0 %v267
    %v377 = vpop.f32.mrf.mxu0
    %v378 = vadd.f32 %v89, %v377
    %v379 = vpop.f32.mrf.mxu0
    %v380 = vadd.f32 %v89, %v379
    %381 = vmatmul.bf16.gmra.mxu0 %v270
    %v382 = vpop.f32.mrf.mxu0
    %v383 = vadd.f32 %v89, %v382
    %v384 = vpop.f32.mrf.mxu0
    %v385 = vadd.f32 %v89, %v384
    %386 = vmatmul.bf16.gmra.mxu0 %v273
    %v387 = vpop.f32.mrf.mxu0
    %v388 = vadd.f32 %v89, %v387
    %v389 = vpop.f32.mrf.mxu0
    %v390 = vadd.f32 %v89, %v389
    %391 = vmatmul.bf16.gmra.mxu0 %v276
    %v392 = vpop.f32.mrf.mxu0
    %v393 = vadd.f32 %v89, %v392
    %v394 = vpop.f32.mrf.mxu0
    %v395 = vadd.f32 %v89, %v394
    %396 = vmatmul.bf16.gmra.mxu0 %v279
    %v397 = vpop.f32.mrf.mxu0
    %v398 = vadd.f32 %v89, %v397
    %v399 = vpop.f32.mrf.mxu0
    %v400 = vadd.f32 %v89, %v399
    %401 = vmatmul.bf16.gmra.mxu0 %v282
    %v402 = vpop.f32.mrf.mxu0
    %v403 = vadd.f32 %v89, %v402
    %v404 = vpop.f32.mrf.mxu0
    %v405 = vadd.f32 %v89, %v404
    %406 = vmatmul.bf16.gmra.mxu0 %v285
    %v407 = vpop.f32.mrf.mxu0
    %v408 = vadd.f32 %v89, %v407
    %v409 = vpop.f32.mrf.mxu0
    %v410 = vadd.f32 %v89, %v409
    %411 = vmatmul.bf16.gmra.mxu0 %v288
    %v412 = vpop.f32.mrf.mxu0
    %v413 = vadd.f32 %v89, %v412
    %v414 = vpop.f32.mrf.mxu0
    %v415 = vadd.f32 %v89, %v414
    %416 = vmatmul.bf16.gmra.mxu0 %v291
    %v417 = vpop.f32.mrf.mxu0
    %v418 = vadd.f32 %v89, %v417
    %v419 = vpop.f32.mrf.mxu0
    %v420 = vadd.f32 %v89, %v419
    %421 = vmatmul.bf16.gmra.mxu0 %v294
    %v422 = vpop.f32.mrf.mxu0
    %v423 = vadd.f32 %v89, %v422
    %v424 = vpop.f32.mrf.mxu0
    %v425 = vadd.f32 %v89, %v424
    %426 = vmatmul.bf16.gmra.mxu0 %v297
    %v427 = vpop.f32.mrf.mxu0
    %v428 = vadd.f32 %v89, %v427
    %v429 = vpop.f32.mrf.mxu0
    %v430 = vadd.f32 %v89, %v429
    %431 = vmatmul.bf16.gmra.mxu0 %v300
    %v432 = vpop.f32.mrf.mxu0
    %v433 = vadd.f32 %v89, %v432
    %v434 = vpop.f32.mrf.mxu0
    %v435 = vadd.f32 %v89, %v434
    %436 = vmatmul.bf16.gmra.mxu0 %v303
    %v437 = vpop.f32.mrf.mxu0
    %v438 = vadd.f32 %v89, %v437
    %v439 = vpop.f32.mrf.mxu0
    %v440 = vadd.f32 %v89, %v439
    %441 = vmatmul.bf16.gmra.mxu0 %v306
    %v442 = vpop.f32.mrf.mxu0
    %v443 = vadd.f32 %v89, %v442
    %v444 = vpop.f32.mrf.mxu0
    %v445 = vadd.f32 %v89, %v444
    %446 = vmatmul.bf16.gmra.mxu0 %v309
    %v447 = vpop.f32.mrf.mxu0
    %v448 = vadd.f32 %v89, %v447
    %v449 = vpop.f32.mrf.mxu0
    %v450 = vadd.f32 %v89, %v449
    %451 = vmatmul.bf16.gmra.mxu0 %v312
    %v452 = vpop.f32.mrf.mxu0
    %v453 = vadd.f32 %v89, %v452
    %v454 = vpop.f32.mrf.mxu0
    %v455 = vadd.f32 %v89, %v454
    %456 = vmatmul.bf16.gmra.mxu0 %v315
    %v457 = vpop.f32.mrf.mxu0
    %v458 = vadd.f32 %v89, %v457
    %v459 = vpop.f32.mrf.mxu0
    %v460 = vadd.f32 %v89, %v459
    %461 = vmatmul.bf16.gmra.mxu0 %v318
    %v462 = vpop.f32.mrf.mxu0
    %v463 = vadd.f32 %v89, %v462
    %v464 = vpop.f32.mrf.mxu0
    %v465 = vadd.f32 %v89, %v464
    %466 = vmatmul.bf16.gmra.mxu0 %v321
    %v467 = vpop.f32.mrf.mxu0
    %v468 = vadd.f32 %v89, %v467
    %v469 = vpop.f32.mrf.mxu0
    %v470 = vadd.f32 %v89, %v469
    %471 = vmatmul.bf16.gmra.mxu0 %v324
    %v472 = vpop.f32.mrf.mxu0
    %v473 = vadd.f32 %v89, %v472
    %v474 = vpop.f32.mrf.mxu0
    %v475 = vadd.f32 %v89, %v474
    %476 = vmatmul.bf16.gmra.mxu0 %v327
    %v477 = vpop.f32.mrf.mxu0
    %v478 = vadd.f32 %v89, %v477
    %v479 = vpop.f32.mrf.mxu0
    %v480 = vadd.f32 %v89, %v479
    %481 = vmatmul.bf16.gmra.mxu0 %v330
    %v482 = vpop.f32.mrf.mxu0
    %v483 = vadd.f32 %v89, %v482
    %v484 = vpop.f32.mrf.mxu0
    %v485 = vadd.f32 %v89, %v484
    %486 = vmatmul.bf16.gmra.mxu0 %v333
    %v487 = vpop.f32.mrf.mxu0
    %v488 = vadd.f32 %v89, %v487
    %v489 = vpop.f32.mrf.mxu0
    %v490 = vadd.f32 %v89, %v489
    %491 = vmatmul.bf16.gmra.mxu0 %v336
    %v492 = vpop.f32.mrf.mxu0
    %v493 = vadd.f32 %v89, %v492
    %v494 = vpop.f32.mrf.mxu0
    %v495 = vadd.f32 %v89, %v494
    %496 = vmatmul.bf16.gmra.mxu0 %v339
    %v497 = vpop.f32.mrf.mxu0
    %v498 = vadd.f32 %v89, %v497
    %v499 = vpop.f32.mrf.mxu0
    %v500 = vadd.f32 %v89, %v499
    %501 = vmatmul.bf16.gmra.mxu0 %v342
    %v502 = vpop.f32.mrf.mxu0
    %v503 = vadd.f32 %v89, %v502
    %v504 = vpop.f32.mrf.mxu0
    %v505 = vadd.f32 %v89, %v504
    %506 = vmatmul.bf16.gmra.mxu0 %v345
    %v507 = vpop.f32.mrf.mxu0
    %v508 = vadd.f32 %v89, %v507
    %v509 = vpop.f32.mrf.mxu0
    %v510 = vadd.f32 %v89, %v509
    %511 = vmatmul.bf16.gmra.mxu0 %v348
    %v512 = vpop.f32.mrf.mxu0
    %v513 = vadd.f32 %v89, %v512
    %v514 = vpop.f32.mrf.mxu0
    %v515 = vadd.f32 %v89, %v514
    %516 = vmatmul.bf16.gmra.mxu0 %v351
    %v517 = vpop.f32.mrf.mxu0
    %v518 = vadd.f32 %v89, %v517
    %v519 = vpop.f32.mrf.mxu0
    %v520 = vadd.f32 %v89, %v519
    %521 = vdwg.mxu0
    %v522 = vmax.f32 %v363, 0.0
    %v523 = vmax.f32 %v365, 0.0
    %v524 = vmax.f32 %v368, 0.0
    %v525 = vmax.f32 %v370, 0.0
    %v526 = vmax.f32 %v373, 0.0
    %v527 = vmax.f32 %v375, 0.0
    %v528 = vmax.f32 %v378, 0.0
    %v529 = vmax.f32 %v380, 0.0
    %v530 = vmax.f32 %v383, 0.0
    %v531 = vmax.f32 %v385, 0.0
    %v532 = vmax.f32 %v388, 0.0
    %v533 = vmax.f32 %v390, 0.0
    %v534 = vmax.f32 %v393, 0.0
    %v535 = vmax.f32 %v395, 0.0
    %v536 = vmax.f32 %v398, 0.0
    %v537 = vmax.f32 %v400, 0.0
    %v538 = vmax.f32 %v403, 0.0
    %v539 = vmax.f32 %v405, 0.0
    %v540 = vmax.f32 %v408, 0.0
    %v541 = vmax.f32 %v410, 0.0
    %v542 = vmax.f32 %v413, 0.0
    %v543 = vmax.f32 %v415, 0.0
    %v544 = vmax.f32 %v418, 0.0
    %v545 = vmax.f32 %v420, 0.0
    %v546 = vmax.f32 %v423, 0.0
    %v547 = vmax.f32 %v425, 0.0
    %v548 = vmax.f32 %v428, 0.0
    %v549 = vmax.f32 %v430, 0.0
    %v550 = vmax.f32 %v433, 0.0
    %v551 = vmax.f32 %v435, 0.0
    %v552 = vmax.f32 %v438, 0.0
    %v553 = vmax.f32 %v440, 0.0
    %v554 = vmax.f32 %v443, 0.0
    %v555 = vmax.f32 %v445, 0.0
    %v556 = vmax.f32 %v448, 0.0
    %v557 = vmax.f32 %v450, 0.0
    %v558 = vmax.f32 %v453, 0.0
    %v559 = vmax.f32 %v455, 0.0
    %v560 = vmax.f32 %v458, 0.0
    %v561 = vmax.f32 %v460, 0.0
    %v562 = vmax.f32 %v463, 0.0
    %v563 = vmax.f32 %v465, 0.0
    %v564 = vmax.f32 %v468, 0.0
    %v565 = vmax.f32 %v470, 0.0
    %v566 = vmax.f32 %v473, 0.0
    %v567 = vmax.f32 %v475, 0.0
    %v568 = vmax.f32 %v478, 0.0
    %v569 = vmax.f32 %v480, 0.0
    %v570 = vmax.f32 %v483, 0.0
    %v571 = vmax.f32 %v485, 0.0
    %v572 = vmax.f32 %v488, 0.0
    %v573 = vmax.f32 %v490, 0.0
    %v574 = vmax.f32 %v493, 0.0
    %v575 = vmax.f32 %v495, 0.0
    %v576 = vmax.f32 %v498, 0.0
    %v577 = vmax.f32 %v500, 0.0
    %v578 = vmax.f32 %v503, 0.0
    %v579 = vmax.f32 %v505, 0.0
    %v580 = vmax.f32 %v508, 0.0
    %v581 = vmax.f32 %v510, 0.0
    %v582 = vmax.f32 %v513, 0.0
    %v583 = vmax.f32 %v515, 0.0
    %v584 = vmax.f32 %v518, 0.0
    %v585 = vmax.f32 %v520, 0.0
    %v586 = vpack.c.bf16 %v523, %v522
    %v587 = vpack.c.bf16 %v525, %v524
    %v588 = vpack.c.bf16 %v527, %v526
    %v589 = vpack.c.bf16 %v529, %v528
    %v590 = vpack.c.bf16 %v531, %v530
    %v591 = vpack.c.bf16 %v533, %v532
    %v592 = vpack.c.bf16 %v535, %v534
    %v593 = vpack.c.bf16 %v537, %v536
    %v594 = vpack.c.bf16 %v539, %v538
    %v595 = vpack.c.bf16 %v541, %v540
    %v596 = vpack.c.bf16 %v543, %v542
    %v597 = vpack.c.bf16 %v545, %v544
    %v598 = vpack.c.bf16 %v547, %v546
    %v599 = vpack.c.bf16 %v549, %v548
    %v600 = vpack.c.bf16 %v551, %v550
    %v601 = vpack.c.bf16 %v553, %v552
    %v602 = vpack.c.bf16 %v555, %v554
    %v603 = vpack.c.bf16 %v557, %v556
    %v604 = vpack.c.bf16 %v559, %v558
    %v605 = vpack.c.bf16 %v561, %v560
    %v606 = vpack.c.bf16 %v563, %v562
    %v607 = vpack.c.bf16 %v565, %v564
    %v608 = vpack.c.bf16 %v567, %v566
    %v609 = vpack.c.bf16 %v569, %v568
    %v610 = vpack.c.bf16 %v571, %v570
    %v611 = vpack.c.bf16 %v573, %v572
    %v612 = vpack.c.bf16 %v575, %v574
    %v613 = vpack.c.bf16 %v577, %v576
    %v614 = vpack.c.bf16 %v579, %v578
    %v615 = vpack.c.bf16 %v581, %v580
    %v616 = vpack.c.bf16 %v583, %v582
    %v617 = vpack.c.bf16 %v585, %v584
    %v618 = vld [vmem:[%s2] sm:$0xf]
    %v619 = vld [vmem:[%s2 + $0x4] sm:$0xf]
    %v620 = vld [vmem:[%s2 + $0x8] sm:$0xf]
    %v621 = vld [vmem:[%s2 + $0xc] sm:$0xf]
    %v622 = vld [vmem:[%s2 + $0x10] sm:$0xf]
    %v623 = vld [vmem:[%s2 + $0x14] sm:$0xf]
    %v624 = vld [vmem:[%s2 + $0x18] sm:$0xf]
    %v625 = vld [vmem:[%s2 + $0x1c] sm:$0xf]
    %v626 = vld [vmem:[%s2 + $0x20] sm:$0xf]
    %v627 = vld [vmem:[%s2 + $0x24] sm:$0xf]
    %v628 = vld [vmem:[%s2 + $0x28] sm:$0xf]
    %v629 = vld [vmem:[%s2 + $0x2c] sm:$0xf]
    %v630 = vld [vmem:[%s2 + $0x30] sm:$0xf]
    %v631 = vld [vmem:[%s2 + $0x34] sm:$0xf]
    %v632 = vld [vmem:[%s2 + $0x38] sm:$0xf]
    %v633 = vld [vmem:[%s2 + $0x3c] sm:$0xf]
    %v634 = vld [vmem:[%s4 + $0x1] sm:$0x1]
    %v635 = vperm.slane %v634, 0
    %v652 = vunpack.c.l.b16 %v618
    %v653 = vunpack.c.l.b16 %v619
    %v654 = vunpack.c.l.b16 %v620
    %v655 = vunpack.c.l.b16 %v621
    %v656 = vunpack.c.l.b16 %v622
    %v657 = vunpack.c.l.b16 %v623
    %v658 = vunpack.c.l.b16 %v624
    %v659 = vunpack.c.l.b16 %v625
    %v660 = vunpack.c.l.b16 %v626
    %v661 = vunpack.c.l.b16 %v627
    %v662 = vunpack.c.l.b16 %v628
    %v663 = vunpack.c.l.b16 %v629
    %v664 = vunpack.c.l.b16 %v630
    %v665 = vunpack.c.l.b16 %v631
    %v666 = vunpack.c.l.b16 %v632
    %v667 = vunpack.c.l.b16 %v633
    %v668 = vpack.c.b16 %v653, %v652
    %v669 = vpack.c.b16 %v655, %v654
    %v670 = vpack.c.b16 %v657, %v656
    %v671 = vpack.c.b16 %v659, %v658
    %v672 = vpack.c.b16 %v661, %v660
    %v673 = vpack.c.b16 %v663, %v662
    %v674 = vpack.c.b16 %v665, %v664
    %v675 = vpack.c.b16 %v667, %v666
    %684 = vmatpush.bf16.msra.mxu0 %v675
    %685 = vmatpush.bf16.msra.mxu0 %v674
    %686 = vmatpush.bf16.msra.mxu0 %v673
    %687 = vmatpush.bf16.msra.mxu0 %v672
    %688 = vmatpush.bf16.msra.mxu0 %v671
    %689 = vmatpush.bf16.msra.mxu0 %v670
    %690 = vmatpush.bf16.msra.mxu0 %v669
    %691 = vmatpush.bf16.msra.mxu0 %v668
    %692 = vmatmul.bf16.gmra.mxu0 %v586
    %v693 = vpop.f32.mrf.mxu0
    %v694 = vadd.f32 %v635, %v693
    %v695 = vpop.f32.mrf.mxu0
    %v696 = vadd.f32 %v635, %v695
    %697 = vmatmul.bf16.gmra.mxu0 %v587
    %v698 = vpop.f32.mrf.mxu0
    %v699 = vadd.f32 %v635, %v698
    %v700 = vpop.f32.mrf.mxu0
    %v701 = vadd.f32 %v635, %v700
    %702 = vmatmul.bf16.gmra.mxu0 %v588
    %v703 = vpop.f32.mrf.mxu0
    %v704 = vadd.f32 %v635, %v703
    %v705 = vpop.f32.mrf.mxu0
    %v706 = vadd.f32 %v635, %v705
    %707 = vmatmul.bf16.gmra.mxu0 %v589
    %v708 = vpop.f32.mrf.mxu0
    %v709 = vadd.f32 %v635, %v708
    %v710 = vpop.f32.mrf.mxu0
    %v711 = vadd.f32 %v635, %v710
    %712 = vmatmul.bf16.gmra.mxu0 %v590
    %v713 = vpop.f32.mrf.mxu0
    %v714 = vadd.f32 %v635, %v713
    %v715 = vpop.f32.mrf.mxu0
    %v716 = vadd.f32 %v635, %v715
    %717 = vmatmul.bf16.gmra.mxu0 %v591
    %v718 = vpop.f32.mrf.mxu0
    %v719 = vadd.f32 %v635, %v718
    %v720 = vpop.f32.mrf.mxu0
    %v721 = vadd.f32 %v635, %v720
    %722 = vmatmul.bf16.gmra.mxu0 %v592
    %v723 = vpop.f32.mrf.mxu0
    %v724 = vadd.f32 %v635, %v723
    %v725 = vpop.f32.mrf.mxu0
    %v726 = vadd.f32 %v635, %v725
    %727 = vmatmul.bf16.gmra.mxu0 %v593
    %v728 = vpop.f32.mrf.mxu0
    %v729 = vadd.f32 %v635, %v728
    %v730 = vpop.f32.mrf.mxu0
    %v731 = vadd.f32 %v635, %v730
    %732 = vmatmul.bf16.gmra.mxu0 %v594
    %v733 = vpop.f32.mrf.mxu0
    %v734 = vadd.f32 %v635, %v733
    %v735 = vpop.f32.mrf.mxu0
    %v736 = vadd.f32 %v635, %v735
    %737 = vmatmul.bf16.gmra.mxu0 %v595
    %v738 = vpop.f32.mrf.mxu0
    %v739 = vadd.f32 %v635, %v738
    %v740 = vpop.f32.mrf.mxu0
    %v741 = vadd.f32 %v635, %v740
    %742 = vmatmul.bf16.gmra.mxu0 %v596
    %v743 = vpop.f32.mrf.mxu0
    %v744 = vadd.f32 %v635, %v743
    %v745 = vpop.f32.mrf.mxu0
    %v746 = vadd.f32 %v635, %v745
    %747 = vmatmul.bf16.gmra.mxu0 %v597
    %v748 = vpop.f32.mrf.mxu0
    %v749 = vadd.f32 %v635, %v748
    %v750 = vpop.f32.mrf.mxu0
    %v751 = vadd.f32 %v635, %v750
    %752 = vmatmul.bf16.gmra.mxu0 %v598
    %v753 = vpop.f32.mrf.mxu0
    %v754 = vadd.f32 %v635, %v753
    %v755 = vpop.f32.mrf.mxu0
    %v756 = vadd.f32 %v635, %v755
    %757 = vmatmul.bf16.gmra.mxu0 %v599
    %v758 = vpop.f32.mrf.mxu0
    %v759 = vadd.f32 %v635, %v758
    %v760 = vpop.f32.mrf.mxu0
    %v761 = vadd.f32 %v635, %v760
    %762 = vmatmul.bf16.gmra.mxu0 %v600
    %v763 = vpop.f32.mrf.mxu0
    %v764 = vadd.f32 %v635, %v763
    %v765 = vpop.f32.mrf.mxu0
    %v766 = vadd.f32 %v635, %v765
    %767 = vmatmul.bf16.gmra.mxu0 %v601
    %v768 = vpop.f32.mrf.mxu0
    %v769 = vadd.f32 %v635, %v768
    %v770 = vpop.f32.mrf.mxu0
    %v771 = vadd.f32 %v635, %v770
    %772 = vmatmul.bf16.gmra.mxu0 %v602
    %v773 = vpop.f32.mrf.mxu0
    %v774 = vadd.f32 %v635, %v773
    %v775 = vpop.f32.mrf.mxu0
    %v776 = vadd.f32 %v635, %v775
    %777 = vmatmul.bf16.gmra.mxu0 %v603
    %v778 = vpop.f32.mrf.mxu0
    %v779 = vadd.f32 %v635, %v778
    %v780 = vpop.f32.mrf.mxu0
    %v781 = vadd.f32 %v635, %v780
    %782 = vmatmul.bf16.gmra.mxu0 %v604
    %v783 = vpop.f32.mrf.mxu0
    %v784 = vadd.f32 %v635, %v783
    %v785 = vpop.f32.mrf.mxu0
    %v786 = vadd.f32 %v635, %v785
    %787 = vmatmul.bf16.gmra.mxu0 %v605
    %v788 = vpop.f32.mrf.mxu0
    %v789 = vadd.f32 %v635, %v788
    %v790 = vpop.f32.mrf.mxu0
    %v791 = vadd.f32 %v635, %v790
    %792 = vmatmul.bf16.gmra.mxu0 %v606
    %v793 = vpop.f32.mrf.mxu0
    %v794 = vadd.f32 %v635, %v793
    %v795 = vpop.f32.mrf.mxu0
    %v796 = vadd.f32 %v635, %v795
    %797 = vmatmul.bf16.gmra.mxu0 %v607
    %v798 = vpop.f32.mrf.mxu0
    %v799 = vadd.f32 %v635, %v798
    %v800 = vpop.f32.mrf.mxu0
    %v801 = vadd.f32 %v635, %v800
    %802 = vmatmul.bf16.gmra.mxu0 %v608
    %v803 = vpop.f32.mrf.mxu0
    %v804 = vadd.f32 %v635, %v803
    %v805 = vpop.f32.mrf.mxu0
    %v806 = vadd.f32 %v635, %v805
    %807 = vmatmul.bf16.gmra.mxu0 %v609
    %v808 = vpop.f32.mrf.mxu0
    %v809 = vadd.f32 %v635, %v808
    %v810 = vpop.f32.mrf.mxu0
    %v811 = vadd.f32 %v635, %v810
    %812 = vmatmul.bf16.gmra.mxu0 %v610
    %v813 = vpop.f32.mrf.mxu0
    %v814 = vadd.f32 %v635, %v813
    %v815 = vpop.f32.mrf.mxu0
    %v816 = vadd.f32 %v635, %v815
    %817 = vmatmul.bf16.gmra.mxu0 %v611
    %v818 = vpop.f32.mrf.mxu0
    %v819 = vadd.f32 %v635, %v818
    %v820 = vpop.f32.mrf.mxu0
    %v821 = vadd.f32 %v635, %v820
    %822 = vmatmul.bf16.gmra.mxu0 %v612
    %v823 = vpop.f32.mrf.mxu0
    %v824 = vadd.f32 %v635, %v823
    %v825 = vpop.f32.mrf.mxu0
    %v826 = vadd.f32 %v635, %v825
    %827 = vmatmul.bf16.gmra.mxu0 %v613
    %v828 = vpop.f32.mrf.mxu0
    %v829 = vadd.f32 %v635, %v828
    %v830 = vpop.f32.mrf.mxu0
    %v831 = vadd.f32 %v635, %v830
    %832 = vmatmul.bf16.gmra.mxu0 %v614
    %v833 = vpop.f32.mrf.mxu0
    %v834 = vadd.f32 %v635, %v833
    %v835 = vpop.f32.mrf.mxu0
    %v836 = vadd.f32 %v635, %v835
    %837 = vmatmul.bf16.gmra.mxu0 %v615
    %v838 = vpop.f32.mrf.mxu0
    %v839 = vadd.f32 %v635, %v838
    %v840 = vpop.f32.mrf.mxu0
    %v841 = vadd.f32 %v635, %v840
    %842 = vmatmul.bf16.gmra.mxu0 %v616
    %v843 = vpop.f32.mrf.mxu0
    %v844 = vadd.f32 %v635, %v843
    %v845 = vpop.f32.mrf.mxu0
    %v846 = vadd.f32 %v635, %v845
    %847 = vmatmul.bf16.gmra.mxu0 %v617
    %v848 = vpop.f32.mrf.mxu0
    %v849 = vadd.f32 %v635, %v848
    %v850 = vpop.f32.mrf.mxu0
    %v851 = vadd.f32 %v635, %v850
    %852 = vdwg.mxu0
    %v853 = vmax.f32 %v694, 0.0
    %v854 = vmax.f32 %v696, 0.0
    %v855 = vmax.f32 %v699, 0.0
    %v856 = vmax.f32 %v701, 0.0
    %v857 = vmax.f32 %v704, 0.0
    %v858 = vmax.f32 %v706, 0.0
    %v859 = vmax.f32 %v709, 0.0
    %v860 = vmax.f32 %v711, 0.0
    %v861 = vmax.f32 %v714, 0.0
    %v862 = vmax.f32 %v716, 0.0
    %v863 = vmax.f32 %v719, 0.0
    %v864 = vmax.f32 %v721, 0.0
    %v865 = vmax.f32 %v724, 0.0
    %v866 = vmax.f32 %v726, 0.0
    %v867 = vmax.f32 %v729, 0.0
    %v868 = vmax.f32 %v731, 0.0
    %v869 = vmax.f32 %v734, 0.0
    %v870 = vmax.f32 %v736, 0.0
    %v871 = vmax.f32 %v739, 0.0
    %v872 = vmax.f32 %v741, 0.0
    %v873 = vmax.f32 %v744, 0.0
    %v874 = vmax.f32 %v746, 0.0
    %v875 = vmax.f32 %v749, 0.0
    %v876 = vmax.f32 %v751, 0.0
    %v877 = vmax.f32 %v754, 0.0
    %v878 = vmax.f32 %v756, 0.0
    %v879 = vmax.f32 %v759, 0.0
    %v880 = vmax.f32 %v761, 0.0
    %v881 = vmax.f32 %v764, 0.0
    %v882 = vmax.f32 %v766, 0.0
    %v883 = vmax.f32 %v769, 0.0
    %v884 = vmax.f32 %v771, 0.0
    %v885 = vmax.f32 %v774, 0.0
    %v886 = vmax.f32 %v776, 0.0
    %v887 = vmax.f32 %v779, 0.0
    %v888 = vmax.f32 %v781, 0.0
    %v889 = vmax.f32 %v784, 0.0
    %v890 = vmax.f32 %v786, 0.0
    %v891 = vmax.f32 %v789, 0.0
    %v892 = vmax.f32 %v791, 0.0
    %v893 = vmax.f32 %v794, 0.0
    %v894 = vmax.f32 %v796, 0.0
    %v895 = vmax.f32 %v799, 0.0
    %v896 = vmax.f32 %v801, 0.0
    %v897 = vmax.f32 %v804, 0.0
    %v898 = vmax.f32 %v806, 0.0
    %v899 = vmax.f32 %v809, 0.0
    %v900 = vmax.f32 %v811, 0.0
    %v901 = vmax.f32 %v814, 0.0
    %v902 = vmax.f32 %v816, 0.0
    %v903 = vmax.f32 %v819, 0.0
    %v904 = vmax.f32 %v821, 0.0
    %v905 = vmax.f32 %v824, 0.0
    %v906 = vmax.f32 %v826, 0.0
    %v907 = vmax.f32 %v829, 0.0
    %v908 = vmax.f32 %v831, 0.0
    %v909 = vmax.f32 %v834, 0.0
    %v910 = vmax.f32 %v836, 0.0
    %v911 = vmax.f32 %v839, 0.0
    %v912 = vmax.f32 %v841, 0.0
    %v913 = vmax.f32 %v844, 0.0
    %v914 = vmax.f32 %v846, 0.0
    %v915 = vmax.f32 %v849, 0.0
    %v916 = vmax.f32 %v851, 0.0
    %v917 = vpack.c.bf16 %v854, %v853
    %v918 = vpack.c.bf16 %v856, %v855
    %v919 = vpack.c.bf16 %v858, %v857
    %v920 = vpack.c.bf16 %v860, %v859
    %v921 = vpack.c.bf16 %v862, %v861
    %v922 = vpack.c.bf16 %v864, %v863
    %v923 = vpack.c.bf16 %v866, %v865
    %v924 = vpack.c.bf16 %v868, %v867
    %v925 = vpack.c.bf16 %v870, %v869
    %v926 = vpack.c.bf16 %v872, %v871
    %v927 = vpack.c.bf16 %v874, %v873
    %v928 = vpack.c.bf16 %v876, %v875
    %v929 = vpack.c.bf16 %v878, %v877
    %v930 = vpack.c.bf16 %v880, %v879
    %v931 = vpack.c.bf16 %v882, %v881
    %v932 = vpack.c.bf16 %v884, %v883
    %v933 = vpack.c.bf16 %v886, %v885
    %v934 = vpack.c.bf16 %v888, %v887
    %v935 = vpack.c.bf16 %v890, %v889
    %v936 = vpack.c.bf16 %v892, %v891
    %v937 = vpack.c.bf16 %v894, %v893
    %v938 = vpack.c.bf16 %v896, %v895
    %v939 = vpack.c.bf16 %v898, %v897
    %v940 = vpack.c.bf16 %v900, %v899
    %v941 = vpack.c.bf16 %v902, %v901
    %v942 = vpack.c.bf16 %v904, %v903
    %v943 = vpack.c.bf16 %v906, %v905
    %v944 = vpack.c.bf16 %v908, %v907
    %v945 = vpack.c.bf16 %v910, %v909
    %v946 = vpack.c.bf16 %v912, %v911
    %v947 = vpack.c.bf16 %v914, %v913
    %v948 = vpack.c.bf16 %v916, %v915
    %v949 = vld [vmem:[%s3] sm:$0xf]
    %v950 = vld [vmem:[%s3 + $0x4] sm:$0xf]
    %v951 = vld [vmem:[%s3 + $0x8] sm:$0xf]
    %v952 = vld [vmem:[%s3 + $0xc] sm:$0xf]
    %v953 = vld [vmem:[%s3 + $0x10] sm:$0xf]
    %v954 = vld [vmem:[%s3 + $0x14] sm:$0xf]
    %v955 = vld [vmem:[%s3 + $0x18] sm:$0xf]
    %v956 = vld [vmem:[%s3 + $0x1c] sm:$0xf]
    %v957 = vld [vmem:[%s3 + $0x20] sm:$0xf]
    %v958 = vld [vmem:[%s3 + $0x24] sm:$0xf]
    %v959 = vld [vmem:[%s3 + $0x28] sm:$0xf]
    %v960 = vld [vmem:[%s3 + $0x2c] sm:$0xf]
    %v961 = vld [vmem:[%s3 + $0x30] sm:$0xf]
    %v962 = vld [vmem:[%s3 + $0x34] sm:$0xf]
    %v963 = vld [vmem:[%s3 + $0x38] sm:$0xf]
    %v964 = vld [vmem:[%s3 + $0x3c] sm:$0xf]
    %v965 = vld [vmem:[%s4 + $0x2] sm:$0x1]
    %v966 = vperm.slane %v965, 0
    %v983 = vunpack.c.l.b16 %v949
    %v984 = vunpack.c.l.b16 %v950
    %v985 = vunpack.c.l.b16 %v951
    %v986 = vunpack.c.l.b16 %v952
    %v987 = vunpack.c.l.b16 %v953
    %v988 = vunpack.c.l.b16 %v954
    %v989 = vunpack.c.l.b16 %v955
    %v990 = vunpack.c.l.b16 %v956
    %v991 = vunpack.c.l.b16 %v957
    %v992 = vunpack.c.l.b16 %v958
    %v993 = vunpack.c.l.b16 %v959
    %v994 = vunpack.c.l.b16 %v960
    %v995 = vunpack.c.l.b16 %v961
    %v996 = vunpack.c.l.b16 %v962
    %v997 = vunpack.c.l.b16 %v963
    %v998 = vunpack.c.l.b16 %v964
    %v999 = vpack.c.b16 %v984, %v983
    %v1000 = vpack.c.b16 %v986, %v985
    %v1001 = vpack.c.b16 %v988, %v987
    %v1002 = vpack.c.b16 %v990, %v989
    %v1003 = vpack.c.b16 %v992, %v991
    %v1004 = vpack.c.b16 %v994, %v993
    %v1005 = vpack.c.b16 %v996, %v995
    %v1006 = vpack.c.b16 %v998, %v997
    %1015 = vmatpush.bf16.msra.mxu0 %v1006
    %1016 = vmatpush.bf16.msra.mxu0 %v1005
    %1017 = vmatpush.bf16.msra.mxu0 %v1004
    %1018 = vmatpush.bf16.msra.mxu0 %v1003
    %1019 = vmatpush.bf16.msra.mxu0 %v1002
    %1020 = vmatpush.bf16.msra.mxu0 %v1001
    %1021 = vmatpush.bf16.msra.mxu0 %v1000
    %1022 = vmatpush.bf16.msra.mxu0 %v999
    %1023 = vmatmul.bf16.gmra.mxu0 %v917
    %v1024 = vpop.f32.mrf.mxu0
    %v1025 = vadd.f32 %v966, %v1024
    %v1026 = vpop.f32.mrf.mxu0
    %v1027 = vadd.f32 %v966, %v1026
    %1028 = vmatmul.bf16.gmra.mxu0 %v918
    %v1029 = vpop.f32.mrf.mxu0
    %v1030 = vadd.f32 %v966, %v1029
    %v1031 = vpop.f32.mrf.mxu0
    %v1032 = vadd.f32 %v966, %v1031
    %1033 = vmatmul.bf16.gmra.mxu0 %v919
    %v1034 = vpop.f32.mrf.mxu0
    %v1035 = vadd.f32 %v966, %v1034
    %v1036 = vpop.f32.mrf.mxu0
    %v1037 = vadd.f32 %v966, %v1036
    %1038 = vmatmul.bf16.gmra.mxu0 %v920
    %v1039 = vpop.f32.mrf.mxu0
    %v1040 = vadd.f32 %v966, %v1039
    %v1041 = vpop.f32.mrf.mxu0
    %v1042 = vadd.f32 %v966, %v1041
    %1043 = vmatmul.bf16.gmra.mxu0 %v921
    %v1044 = vpop.f32.mrf.mxu0
    %v1045 = vadd.f32 %v966, %v1044
    %v1046 = vpop.f32.mrf.mxu0
    %v1047 = vadd.f32 %v966, %v1046
    %1048 = vmatmul.bf16.gmra.mxu0 %v922
    %v1049 = vpop.f32.mrf.mxu0
    %v1050 = vadd.f32 %v966, %v1049
    %v1051 = vpop.f32.mrf.mxu0
    %v1052 = vadd.f32 %v966, %v1051
    %1053 = vmatmul.bf16.gmra.mxu0 %v923
    %v1054 = vpop.f32.mrf.mxu0
    %v1055 = vadd.f32 %v966, %v1054
    %v1056 = vpop.f32.mrf.mxu0
    %v1057 = vadd.f32 %v966, %v1056
    %1058 = vmatmul.bf16.gmra.mxu0 %v924
    %v1059 = vpop.f32.mrf.mxu0
    %v1060 = vadd.f32 %v966, %v1059
    %v1061 = vpop.f32.mrf.mxu0
    %v1062 = vadd.f32 %v966, %v1061
    %1063 = vmatmul.bf16.gmra.mxu0 %v925
    %v1064 = vpop.f32.mrf.mxu0
    %v1065 = vadd.f32 %v966, %v1064
    %v1066 = vpop.f32.mrf.mxu0
    %v1067 = vadd.f32 %v966, %v1066
    %1068 = vmatmul.bf16.gmra.mxu0 %v926
    %v1069 = vpop.f32.mrf.mxu0
    %v1070 = vadd.f32 %v966, %v1069
    %v1071 = vpop.f32.mrf.mxu0
    %v1072 = vadd.f32 %v966, %v1071
    %1073 = vmatmul.bf16.gmra.mxu0 %v927
    %v1074 = vpop.f32.mrf.mxu0
    %v1075 = vadd.f32 %v966, %v1074
    %v1076 = vpop.f32.mrf.mxu0
    %v1077 = vadd.f32 %v966, %v1076
    %1078 = vmatmul.bf16.gmra.mxu0 %v928
    %v1079 = vpop.f32.mrf.mxu0
    %v1080 = vadd.f32 %v966, %v1079
    %v1081 = vpop.f32.mrf.mxu0
    %v1082 = vadd.f32 %v966, %v1081
    %1083 = vmatmul.bf16.gmra.mxu0 %v929
    %v1084 = vpop.f32.mrf.mxu0
    %v1085 = vadd.f32 %v966, %v1084
    %v1086 = vpop.f32.mrf.mxu0
    %v1087 = vadd.f32 %v966, %v1086
    %1088 = vmatmul.bf16.gmra.mxu0 %v930
    %v1089 = vpop.f32.mrf.mxu0
    %v1090 = vadd.f32 %v966, %v1089
    %v1091 = vpop.f32.mrf.mxu0
    %v1092 = vadd.f32 %v966, %v1091
    %1093 = vmatmul.bf16.gmra.mxu0 %v931
    %v1094 = vpop.f32.mrf.mxu0
    %v1095 = vadd.f32 %v966, %v1094
    %v1096 = vpop.f32.mrf.mxu0
    %v1097 = vadd.f32 %v966, %v1096
    %1098 = vmatmul.bf16.gmra.mxu0 %v932
    %v1099 = vpop.f32.mrf.mxu0
    %v1100 = vadd.f32 %v966, %v1099
    %v1101 = vpop.f32.mrf.mxu0
    %v1102 = vadd.f32 %v966, %v1101
    %1103 = vmatmul.bf16.gmra.mxu0 %v933
    %v1104 = vpop.f32.mrf.mxu0
    %v1105 = vadd.f32 %v966, %v1104
    %v1106 = vpop.f32.mrf.mxu0
    %v1107 = vadd.f32 %v966, %v1106
    %1108 = vmatmul.bf16.gmra.mxu0 %v934
    %v1109 = vpop.f32.mrf.mxu0
    %v1110 = vadd.f32 %v966, %v1109
    %v1111 = vpop.f32.mrf.mxu0
    %v1112 = vadd.f32 %v966, %v1111
    %1113 = vmatmul.bf16.gmra.mxu0 %v935
    %v1114 = vpop.f32.mrf.mxu0
    %v1115 = vadd.f32 %v966, %v1114
    %v1116 = vpop.f32.mrf.mxu0
    %v1117 = vadd.f32 %v966, %v1116
    %1118 = vmatmul.bf16.gmra.mxu0 %v936
    %v1119 = vpop.f32.mrf.mxu0
    %v1120 = vadd.f32 %v966, %v1119
    %v1121 = vpop.f32.mrf.mxu0
    %v1122 = vadd.f32 %v966, %v1121
    %1123 = vmatmul.bf16.gmra.mxu0 %v937
    %v1124 = vpop.f32.mrf.mxu0
    %v1125 = vadd.f32 %v966, %v1124
    %v1126 = vpop.f32.mrf.mxu0
    %v1127 = vadd.f32 %v966, %v1126
    %1128 = vmatmul.bf16.gmra.mxu0 %v938
    %v1129 = vpop.f32.mrf.mxu0
    %v1130 = vadd.f32 %v966, %v1129
    %v1131 = vpop.f32.mrf.mxu0
    %v1132 = vadd.f32 %v966, %v1131
    %1133 = vmatmul.bf16.gmra.mxu0 %v939
    %v1134 = vpop.f32.mrf.mxu0
    %v1135 = vadd.f32 %v966, %v1134
    %v1136 = vpop.f32.mrf.mxu0
    %v1137 = vadd.f32 %v966, %v1136
    %1138 = vmatmul.bf16.gmra.mxu0 %v940
    %v1139 = vpop.f32.mrf.mxu0
    %v1140 = vadd.f32 %v966, %v1139
    %v1141 = vpop.f32.mrf.mxu0
    %v1142 = vadd.f32 %v966, %v1141
    %1143 = vmatmul.bf16.gmra.mxu0 %v941
    %v1144 = vpop.f32.mrf.mxu0
    %v1145 = vadd.f32 %v966, %v1144
    %v1146 = vpop.f32.mrf.mxu0
    %v1147 = vadd.f32 %v966, %v1146
    %1148 = vmatmul.bf16.gmra.mxu0 %v942
    %v1149 = vpop.f32.mrf.mxu0
    %v1150 = vadd.f32 %v966, %v1149
    %v1151 = vpop.f32.mrf.mxu0
    %v1152 = vadd.f32 %v966, %v1151
    %1153 = vmatmul.bf16.gmra.mxu0 %v943
    %v1154 = vpop.f32.mrf.mxu0
    %v1155 = vadd.f32 %v966, %v1154
    %v1156 = vpop.f32.mrf.mxu0
    %v1157 = vadd.f32 %v966, %v1156
    %1158 = vmatmul.bf16.gmra.mxu0 %v944
    %v1159 = vpop.f32.mrf.mxu0
    %v1160 = vadd.f32 %v966, %v1159
    %v1161 = vpop.f32.mrf.mxu0
    %v1162 = vadd.f32 %v966, %v1161
    %1163 = vmatmul.bf16.gmra.mxu0 %v945
    %v1164 = vpop.f32.mrf.mxu0
    %v1165 = vadd.f32 %v966, %v1164
    %v1166 = vpop.f32.mrf.mxu0
    %v1167 = vadd.f32 %v966, %v1166
    %1168 = vmatmul.bf16.gmra.mxu0 %v946
    %v1169 = vpop.f32.mrf.mxu0
    %v1170 = vadd.f32 %v966, %v1169
    %v1171 = vpop.f32.mrf.mxu0
    %v1172 = vadd.f32 %v966, %v1171
    %1173 = vmatmul.bf16.gmra.mxu0 %v947
    %v1174 = vpop.f32.mrf.mxu0
    %v1175 = vadd.f32 %v966, %v1174
    %v1176 = vpop.f32.mrf.mxu0
    %v1177 = vadd.f32 %v966, %v1176
    %1178 = vmatmul.bf16.gmra.mxu0 %v948
    %v1179 = vpop.f32.mrf.mxu0
    %v1180 = vadd.f32 %v966, %v1179
    %v1181 = vpop.f32.mrf.mxu0
    %v1182 = vadd.f32 %v966, %v1181
    %1183 = vdwg.mxu0
    %1184 = vst [vmem:[#allocation2] sm:$0xff] %v1025
    %1185 = vst [vmem:[#allocation2 + $0x8] sm:$0xff] %v1027
    %1186 = vst [vmem:[#allocation2 + $0x10] sm:$0xff] %v1030
    %1187 = vst [vmem:[#allocation2 + $0x18] sm:$0xff] %v1032
    %1188 = vst [vmem:[#allocation2 + $0x20] sm:$0xff] %v1035
    %1189 = vst [vmem:[#allocation2 + $0x28] sm:$0xff] %v1037
    %1190 = vst [vmem:[#allocation2 + $0x30] sm:$0xff] %v1040
    %1191 = vst [vmem:[#allocation2 + $0x38] sm:$0xff] %v1042
    %1192 = vst [vmem:[#allocation2 + $0x40] sm:$0xff] %v1045
    %1193 = vst [vmem:[#allocation2 + $0x48] sm:$0xff] %v1047
    %1194 = vst [vmem:[#allocation2 + $0x50] sm:$0xff] %v1050
    %1195 = vst [vmem:[#allocation2 + $0x58] sm:$0xff] %v1052
    %1196 = vst [vmem:[#allocation2 + $0x60] sm:$0xff] %v1055
    %1197 = vst [vmem:[#allocation2 + $0x68] sm:$0xff] %v1057
    %1198 = vst [vmem:[#allocation2 + $0x70] sm:$0xff] %v1060
    %1199 = vst [vmem:[#allocation2 + $0x78] sm:$0xff] %v1062
    %1200 = vst [vmem:[#allocation2 + $0x80] sm:$0xff] %v1065
    %1201 = vst [vmem:[#allocation2 + $0x88] sm:$0xff] %v1067
    %1202 = vst [vmem:[#allocation2 + $0x90] sm:$0xff] %v1070
    %1203 = vst [vmem:[#allocation2 + $0x98] sm:$0xff] %v1072
    %1204 = vst [vmem:[#allocation2 + $0xa0] sm:$0xff] %v1075
    %1205 = vst [vmem:[#allocation2 + $0xa8] sm:$0xff] %v1077
    %1206 = vst [vmem:[#allocation2 + $0xb0] sm:$0xff] %v1080
    %1207 = vst [vmem:[#allocation2 + $0xb8] sm:$0xff] %v1082
    %1208 = vst [vmem:[#allocation2 + $0xc0] sm:$0xff] %v1085
    %1209 = vst [vmem:[#allocation2 + $0xc8] sm:$0xff] %v1087
    %1210 = vst [vmem:[#allocation2 + $0xd0] sm:$0xff] %v1090
    %1211 = vst [vmem:[#allocation2 + $0xd8] sm:$0xff] %v1092
    %1212 = vst [vmem:[#allocation2 + $0xe0] sm:$0xff] %v1095
    %1213 = vst [vmem:[#allocation2 + $0xe8] sm:$0xff] %v1097
    %1214 = vst [vmem:[#allocation2 + $0xf0] sm:$0xff] %v1100
    %1215 = vst [vmem:[#allocation2 + $0xf8] sm:$0xff] %v1102
    %1216 = vst [vmem:[#allocation2 + $0x100] sm:$0xff] %v1105
    %1217 = vst [vmem:[#allocation2 + $0x108] sm:$0xff] %v1107
    %1218 = vst [vmem:[#allocation2 + $0x110] sm:$0xff] %v1110
    %1219 = vst [vmem:[#allocation2 + $0x118] sm:$0xff] %v1112
    %1220 = vst [vmem:[#allocation2 + $0x120] sm:$0xff] %v1115
    %1221 = vst [vmem:[#allocation2 + $0x128] sm:$0xff] %v1117
    %1222 = vst [vmem:[#allocation2 + $0x130] sm:$0xff] %v1120
    %1223 = vst [vmem:[#allocation2 + $0x138] sm:$0xff] %v1122
    %1224 = vst [vmem:[#allocation2 + $0x140] sm:$0xff] %v1125
    %1225 = vst [vmem:[#allocation2 + $0x148] sm:$0xff] %v1127
    %1226 = vst [vmem:[#allocation2 + $0x150] sm:$0xff] %v1130
    %1227 = vst [vmem:[#allocation2 + $0x158] sm:$0xff] %v1132
    %1228 = vst [vmem:[#allocation2 + $0x160] sm:$0xff] %v1135
    %1229 = vst [vmem:[#allocation2 + $0x168] sm:$0xff] %v1137
    %1230 = vst [vmem:[#allocation2 + $0x170] sm:$0xff] %v1140
    %1231 = vst [vmem:[#allocation2 + $0x178] sm:$0xff] %v1142
    %1232 = vst [vmem:[#allocation2 + $0x180] sm:$0xff] %v1145
    %1233 = vst [vmem:[#allocation2 + $0x188] sm:$0xff] %v1147
    %1234 = vst [vmem:[#allocation2 + $0x190] sm:$0xff] %v1150
    %1235 = vst [vmem:[#allocation2 + $0x198] sm:$0xff] %v1152
    %1236 = vst [vmem:[#allocation2 + $0x1a0] sm:$0xff] %v1155
    %1237 = vst [vmem:[#allocation2 + $0x1a8] sm:$0xff] %v1157
    %1238 = vst [vmem:[#allocation2 + $0x1b0] sm:$0xff] %v1160
    %1239 = vst [vmem:[#allocation2 + $0x1b8] sm:$0xff] %v1162
    %1240 = vst [vmem:[#allocation2 + $0x1c0] sm:$0xff] %v1165
    %1241 = vst [vmem:[#allocation2 + $0x1c8] sm:$0xff] %v1167
    %1242 = vst [vmem:[#allocation2 + $0x1d0] sm:$0xff] %v1170
    %1243 = vst [vmem:[#allocation2 + $0x1d8] sm:$0xff] %v1172
    %1244 = vst [vmem:[#allocation2 + $0x1e0] sm:$0xff] %v1175
    %1245 = vst [vmem:[#allocation2 + $0x1e8] sm:$0xff] %v1177
    %1246 = vst [vmem:[#allocation2 + $0x1f0] sm:$0xff] %v1180
    %1247 = vst [vmem:[#allocation2 + $0x1f8] sm:$0xff] %v1182
    // Predicated region
    $region22: #{tpu_custom_call.1} parent=1 // pred_check
      _
    $region23: #{tpu_custom_call.1} parent=1 // pred_check_branch
      %1249 = sbr.rel (0) target = $region25
    $region24: #{tpu_custom_call.1} parent=1 // pred_region
      %1251 = vsyncadd [#allocation3], 0
      %s1252 = sshll.u32 [#allocation2], 4
      %s1253 = int_to_ptr.vmem [resolvable:$true] %s1252
      %s1254 = sshll.u32 %s5, 4
      %s1255 = int_to_ptr.hbm [resolvable:$true] %s1254
      %1260 = dma.vmem_to_hbm [thread:$0]  %s1253, 8192, %s1255, [#allocation3], 128, 128, 8
    $region25: #{tpu_custom_call.1} parent=1 // pred_fallthru
      _
    // Predicated region
    $region26: #{tpu_custom_call.1} parent=1 // pred_check
      _
    $region27: #{tpu_custom_call.1} parent=1 // pred_check_branch
      %1262 = sbr.rel (0) target = $region29
    $region28: #{tpu_custom_call.1} parent=1 // pred_region
      %1264 = dma.done [#allocation3], 8192
    $region29: #{tpu_custom_call.1} parent=1 // pred_fallthru
      _
    %1265 = vsyncpa [#allocation3], 1

</llo_original>
